<compile_context>
chip_gen: v7x
topology: tpu7x:2x2x1
jax: 0.10.0
libtpu: 0.0.40
codegen_flags: <defaults>
</compile_context>

<pallas_src>
import functools

import jax
import jax.numpy as jnp
from jax import lax
from jax.experimental import pallas as pl
from jax.experimental.pallas import tpu as pltpu

_LANES = 128
_ACC_SUBLANES = 8                      # f32 accumulator is one (8,128) vreg
_BLOCK_BYTE_BUDGET = 4 * 1024 * 1024   # ~4 MiB per input block (per review)
_SMALL_INPUT_ELEMS = 1 << 15           # below this, plain XLA is faster


def _round_up(a: int, b: int) -> int:
    return (a + b - 1) // b * b


def _num_tensorcores() -> int:
    """2 TensorCores per chip only on v7x-class parts; v5e/v6e are 1-TC."""
    try:
        kind = jax.devices()[0].device_kind.lower()
    except Exception:
        return 1
    return 2 if ("v7" in kind or "7x" in kind) else 1


def _mse_partial_kernel(x_ref, t_ref, o_ref, *, tile_rows, total_rows,
                        blocks_per_core):
    c = pl.program_id(0)   # "core" axis (size 1 on 1-TC chips)
    i = pl.program_id(1)   # streaming reduction axis

    # Zero this core's resident partial-sum block on its first step.
    @pl.when(i == 0)
    def _():
        o_ref[...] = jnp.zeros(o_ref.shape, o_ref.dtype)

    x = x_ref[...]
    t = t_ref[...]
    if x.dtype != jnp.float32:      # static check; no-op for f32 inputs
        x = x.astype(jnp.float32)
        t = t.astype(jnp.float32)
    d = x - t

    block_start = (c * blocks_per_core + i) * tile_rows
    is_full = block_start + tile_rows <= total_rows

    def _fold_acc(dd):
        # Sublane-fold only (pure VPU adds across vregs); the single
        # cross-lane reduce happens once in the wrapper.
        folded = (dd * dd).reshape(tile_rows // _ACC_SUBLANES, _ACC_SUBLANES,
                                   _LANES).sum(axis=0)
        o_ref[...] += folded[None]

    # Fast path: interior blocks, no iota / mask at all.
    @pl.when(is_full)
    def _():
        _fold_acc(d)

    # Masked path: only the ragged last block (and, on a 2-TC chip with an
    # odd block count, the clamped duplicate block, which masks to zero).
    @pl.when(jnp.logical_not(is_full))
    def _():
        rows_left = total_rows - block_start
        row_ids = lax.broadcasted_iota(jnp.int32, (tile_rows, _LANES), 0)
        _fold_acc(jnp.where(row_ids < rows_left, d, 0.0))


def content_loss(x: jax.Array, target: jax.Array, *,
                 block_byte_budget: int = _BLOCK_BYTE_BUDGET,
                 small_input_elems: int = _SMALL_INPUT_ELEMS) -> jax.Array:
    """MSE with 'mean' reduction, matching torch.nn.functional.mse_loss."""
    assert x.shape == target.shape, "input/target shape mismatch"
    if x.dtype != target.dtype:
        common = jnp.promote_types(x.dtype, target.dtype)
        x = x.astype(common)
        target = target.astype(common)
    out_dtype = x.dtype
    n_elems = x.size

    # Small-input fast path: fused XLA beats the pallas_call fixed cost.
    if n_elems <= small_input_elems:
        d = x.astype(jnp.float32) - target.astype(jnp.float32)
        return jnp.mean(d * d).astype(out_dtype)

    xf = jnp.ravel(x)
    tf = jnp.ravel(target)

    rows = n_elems // _LANES
    rem = n_elems - rows * _LANES

    # Sub-row ragged tail (< 128 elements): plain JAX (negligible bytes) so
    # the kernel inputs remain a lane-dense [rows, 128] reshape.
    tail_sum = jnp.float32(0.0)
    if rem:
        xt = xf[rows * _LANES:].astype(jnp.float32)
        tt = tf[rows * _LANES:].astype(jnp.float32)
        tail_sum = jnp.sum((xt - tt) * (xt - tt))
        # TODO(synk): for ragged sizes this prefix slice can materialize a
        # copy of each operand before the custom call; feature-map inputs are
        # virtually always multiples of 128 so this path is rare.
        xf = lax.slice(xf, (0,), (rows * _LANES,))
        tf = lax.slice(tf, (0,), (rows * _LANES,))

    if rows == 0:
        return (tail_sum / jnp.float32(n_elems)).astype(out_dtype)

    x2 = xf.reshape(rows, _LANES)
    t2 = tf.reshape(rows, _LANES)

    # Dtype-aware tile sizing: target ~block_byte_budget per input block and
    # keep the row count a multiple of the dtype's native sublane pack
    # (8 f32 / 16 bf16 / 32 int8-fp8), so narrow dtypes never violate their
    # min-tile constraint.
    itemsize = jnp.dtype(x2.dtype).itemsize
    pack = max(_ACC_SUBLANES, 32 // itemsize)
    max_rows = max(pack, (block_byte_budget // (_LANES * itemsize)) // pack * pack)
    tile_rows = min(max_rows, _round_up(rows, pack))

    n_blocks = pl.cdiv(rows, tile_rows)
    num_cores = min(_num_tensorcores(), n_blocks)
    blocks_per_core = pl.cdiv(n_blocks, num_cores)

    def in_map(c, i):
        # Clamp so a trailing core re-reads (and fully masks) the last valid
        # block when n_blocks is odd, instead of indexing out of range.
        return (jnp.minimum(c * blocks_per_core + i, n_blocks - 1), 0)

    kernel = functools.partial(
        _mse_partial_kernel,
        tile_rows=tile_rows,
        total_rows=rows,
        blocks_per_core=blocks_per_core,
    )

    if num_cores > 1:
        # Real per-TensorCore sharding of the leading axis (v7x only).
        dims = (pltpu.CORE_PARALLEL, pltpu.ARBITRARY)
    else:
        dims = (pltpu.ARBITRARY, pltpu.ARBITRARY)

    cost = pl.CostEstimate(
        flops=3 * rows * _LANES,
        transcendentals=0,
        bytes_accessed=2 * rows * _LANES * itemsize
        + num_cores * _ACC_SUBLANES * _LANES * 4,
    )

    partials = pl.pallas_call(
        kernel,
        out_shape=jax.ShapeDtypeStruct((num_cores, _ACC_SUBLANES, _LANES),
                                       jnp.float32),
        grid_spec=pltpu.PrefetchScalarGridSpec(
            num_scalar_prefetch=0,
            grid=(num_cores, blocks_per_core),
            in_specs=[
                pl.BlockSpec((tile_rows, _LANES), in_map),
                pl.BlockSpec((tile_rows, _LANES), in_map),
            ],
            out_specs=pl.BlockSpec((1, _ACC_SUBLANES, _LANES),
                                   lambda c, i: (c, 0, 0)),
        ),
        compiler_params=pltpu.CompilerParams(
            dimension_semantics=dims,
            vmem_limit_bytes=32 * 1024 * 1024,
        ),
        cost_estimate=cost,
    )(x2, t2)

    total = jnp.sum(partials) + tail_sum
    return (total / jnp.float32(n_elems)).astype(out_dtype)


if __name__ == "__main__":
    key = jax.random.PRNGKey(0)
    k1, k2, k3, k4, k5, k6, k7, k8 = jax.random.split(key, 8)

    def ref_mse(a, b):
        return jnp.mean((a.astype(jnp.float32) - b.astype(jnp.float32)) ** 2)

    # 1) Small NCHW feature map (module's typical demo scale): fast path.
    x_s = jax.random.normal(k1, (2, 4, 16, 16), dtype=jnp.float32)
    t_s = jax.random.normal(k2, (2, 4, 16, 16), dtype=jnp.float32)
    loss_s = content_loss(x_s, t_s)
    jax.block_until_ready(loss_s)
    assert jnp.allclose(loss_s, ref_mse(x_s, t_s), rtol=1e-5, atol=1e-6)

    # 2) Kernel path: multi-block streaming with a masked ragged last block
    #    (small block budget forces several grid steps).
    x_m = jax.random.normal(k3, (2, 8, 48, 48), dtype=jnp.float32)
    t_m = jax.random.normal(k4, (2, 8, 48, 48), dtype=jnp.float32)
    loss_m = content_loss(x_m, t_m, block_byte_budget=64 * 1024,
                          small_input_elems=0)
    jax.block_until_ready(loss_m)
    assert jnp.allclose(loss_m, ref_mse(x_m, t_m), rtol=1e-5, atol=1e-6)

    # 3) Kernel path with a sub-128-element ragged tail handled in the wrapper.
    x_r = jax.random.normal(k5, (3, 5, 11, 13), dtype=jnp.float32)
    t_r = jax.random.normal(k6, (3, 5, 11, 13), dtype=jnp.float32)
    loss_r = content_loss(x_r, t_r, small_input_elems=0)
    jax.block_until_ready(loss_r)
    assert jnp.allclose(loss_r, ref_mse(x_r, t_r), rtol=1e-5, atol=1e-6)

    # 4) bf16 inputs: checks the dtype-aware (16,128) block sizing path.
    x_b = jax.random.normal(k7, (2, 8, 48, 48), dtype=jnp.bfloat16)
    t_b = jax.random.normal(k8, (2, 8, 48, 48), dtype=jnp.bfloat16)
    loss_b = content_loss(x_b, t_b, block_byte_budget=64 * 1024,
                          small_input_elems=0)
    jax.block_until_ready(loss_b)
    assert jnp.allclose(loss_b.astype(jnp.float32), ref_mse(x_b, t_b),
                        rtol=2e-2, atol=1e-2)

    print("KERNEL_OK")
</pallas_src>

<mosaic_0001>
module attributes {stable_mosaic.version = 11 : i64} {
  func.func @_mse_partial_kernel(%arg0: i32, %arg1: i32, %arg2: memref<128x128xf32, #tpu.memory_space<vmem>>, %arg3: memref<128x128xf32, #tpu.memory_space<vmem>>, %arg4: memref<1x8x128xf32, #tpu.memory_space<vmem>>) attributes {dimension_semantics = [#tpu.dimension_semantics<arbitrary>, #tpu.dimension_semantics<arbitrary>], iteration_bounds = array<i64: 1, 3>, scalar_prefetch = 0 : i64, scratch_operands = 0 : i64, tpu.core_type = #tpu.core_type<tc>, window_params = [{transform_indices = @transform_0, window_bounds = array<i64: 128, 128>}, {transform_indices = @transform_1, window_bounds = array<i64: 128, 128>}, {transform_indices = @transform_2, window_bounds = array<i64: 1, 8, 128>}]} {
    %c0_i32 = arith.constant 0 : i32
    %0 = arith.cmpi eq, %arg1, %c0_i32 : i32
    %1 = arith.extui %0 : i1 to i32
    %c0_i32_0 = arith.constant 0 : i32
    %2 = arith.cmpi ne, %1, %c0_i32_0 : i32
    scf.if %2 {
      %cst = arith.constant 0.000000e+00 : f32
      %16 = vector.broadcast %cst : f32 to vector<1x8x128xf32>
      %c0_7 = arith.constant 0 : index
      %c0_8 = arith.constant 0 : index
      %c0_9 = arith.constant 0 : index
      %17 = vector.load %arg4[%c0_7, %c0_8, %c0_9] : memref<1x8x128xf32, #tpu.memory_space<vmem>>, vector<1x8x128xf32>
      tpu.vector_store %arg4[%c0_7, %c0_8, %c0_9], %16 {strides = array<i32>} : memref<1x8x128xf32, #tpu.memory_space<vmem>>, vector<1x8x128xf32>,
    } else {
    }
    %c0 = arith.constant 0 : index
    %c0_1 = arith.constant 0 : index
    %3 = vector.load %arg2[%c0, %c0_1] : memref<128x128xf32, #tpu.memory_space<vmem>>, vector<128x128xf32>
    %c0_2 = arith.constant 0 : index
    %c0_3 = arith.constant 0 : index
    %4 = vector.load %arg3[%c0_2, %c0_3] : memref<128x128xf32, #tpu.memory_space<vmem>>, vector<128x128xf32>
    %5 = arith.subf %3, %4 : vector<128x128xf32>
    %c3_i32 = arith.constant 3 : i32
    %6 = arith.muli %arg0, %c3_i32 : i32
    %7 = arith.addi %6, %arg1 : i32
    %c128_i32 = arith.constant 128 : i32
    %8 = arith.muli %7, %c128_i32 : i32
    %c128_i32_4 = arith.constant 128 : i32
    %9 = arith.addi %8, %c128_i32_4 : i32
    %c288_i32 = arith.constant 288 : i32
    %10 = arith.cmpi sle, %9, %c288_i32 : i32
    %11 = arith.extui %10 : i1 to i32
    %c0_i32_5 = arith.constant 0 : i32
    %12 = arith.cmpi ne, %11, %c0_i32_5 : i32
    scf.if %12 {
      %16 = arith.mulf %5, %5 : vector<128x128xf32>
      %17 = vector.shape_cast %16 : vector<128x128xf32> to vector<16x8x128xf32>
      %cst = arith.constant dense<0.000000e+00> : vector<8x128xf32>
      %18 = vector.multi_reduction <add>, %17, %cst [0] : vector<16x8x128xf32> to vector<8x128xf32>
      %c0_7 = arith.constant 0 : index
      %c0_8 = arith.constant 0 : index
      %c0_9 = arith.constant 0 : index
      %19 = vector.load %arg4[%c0_7, %c0_8, %c0_9] : memref<1x8x128xf32, #tpu.memory_space<vmem>>, vector<1x8x128xf32>
      %20 = vector.shape_cast %18 : vector<8x128xf32> to vector<1x8x128xf32>
      %21 = arith.addf %19, %20 : vector<1x8x128xf32>
      %c0_10 = arith.constant 0 : index
      %c0_11 = arith.constant 0 : index
      %c0_12 = arith.constant 0 : index
      %22 = vector.load %arg4[%c0_10, %c0_11, %c0_12] : memref<1x8x128xf32, #tpu.memory_space<vmem>>, vector<1x8x128xf32>
      tpu.vector_store %arg4[%c0_10, %c0_11, %c0_12], %21 {strides = array<i32>} : memref<1x8x128xf32, #tpu.memory_space<vmem>>, vector<1x8x128xf32>,
    } else {
    }
    %true = arith.constant true
    %13 = arith.xori %10, %true : i1
    %14 = arith.extui %13 : i1 to i32
    %c0_i32_6 = arith.constant 0 : i32
    %15 = arith.cmpi ne, %14, %c0_i32_6 : i32
    scf.if %15 {
      %c288_i32_7 = arith.constant 288 : i32
      %16 = arith.subi %c288_i32_7, %8 : i32
      %17 = tpu.iota {dimensions = array<i32: 0>} : vector<128x128xi32>
      %18 = vector.broadcast %16 : i32 to vector<128x128xi32>
      %19 = arith.cmpi slt, %17, %18 : vector<128x128xi32>
      %cst = arith.constant 0.000000e+00 : f32
      %20 = vector.broadcast %cst : f32 to vector<128x128xf32>
      %21 = arith.select %19, %5, %20 : vector<128x128xi1>, vector<128x128xf32>
      %22 = arith.mulf %21, %21 : vector<128x128xf32>
      %23 = vector.shape_cast %22 : vector<128x128xf32> to vector<16x8x128xf32>
      %cst_8 = arith.constant dense<0.000000e+00> : vector<8x128xf32>
      %24 = vector.multi_reduction <add>, %23, %cst_8 [0] : vector<16x8x128xf32> to vector<8x128xf32>
      %c0_9 = arith.constant 0 : index
      %c0_10 = arith.constant 0 : index
      %c0_11 = arith.constant 0 : index
      %25 = vector.load %arg4[%c0_9, %c0_10, %c0_11] : memref<1x8x128xf32, #tpu.memory_space<vmem>>, vector<1x8x128xf32>
      %26 = vector.shape_cast %24 : vector<8x128xf32> to vector<1x8x128xf32>
      %27 = arith.addf %25, %26 : vector<1x8x128xf32>
      %c0_12 = arith.constant 0 : index
      %c0_13 = arith.constant 0 : index
      %c0_14 = arith.constant 0 : index
      %28 = vector.load %arg4[%c0_12, %c0_13, %c0_14] : memref<1x8x128xf32, #tpu.memory_space<vmem>>, vector<1x8x128xf32>
      tpu.vector_store %arg4[%c0_12, %c0_13, %c0_14], %27 {strides = array<i32>} : memref<1x8x128xf32, #tpu.memory_space<vmem>>, vector<1x8x128xf32>,
    } else {
    }
    return
  }
  func.func @transform_0(%arg0: i32, %arg1: i32) -> (i32, i32) {
    %c3_i32 = arith.constant 3 : i32
    %0 = arith.muli %arg0, %c3_i32 : i32
    %1 = arith.addi %0, %arg1 : i32
    %c2_i32 = arith.constant 2 : i32
    %2 = arith.minsi %1, %c2_i32 : i32
    %c0_i32 = arith.constant 0 : i32
    %c0_i32_0 = arith.constant 0 : i32
    return %2, %c0_i32 : i32, i32
  }
  func.func @transform_1(%arg0: i32, %arg1: i32) -> (i32, i32) {
    %c3_i32 = arith.constant 3 : i32
    %0 = arith.muli %arg0, %c3_i32 : i32
    %1 = arith.addi %0, %arg1 : i32
    %c2_i32 = arith.constant 2 : i32
    %2 = arith.minsi %1, %c2_i32 : i32
    %c0_i32 = arith.constant 0 : i32
    %c0_i32_0 = arith.constant 0 : i32
    return %2, %c0_i32 : i32, i32
  }
  func.func @transform_2(%arg0: i32, %arg1: i32) -> (i32, i32, i32) {
    %c0_i32 = arith.constant 0 : i32
    %c0_i32_0 = arith.constant 0 : i32
    %c0_i32_1 = arith.constant 0 : i32
    return %arg0, %c0_i32, %c0_i32_0 : i32, i32, i32
  }
}

</mosaic_0001>

<llo_original>
// kernel: tpu_custom_call.1
$region0: #{tpu_custom_call.1}
  #allocation0 [shape = 'u32[]', space=smem, size = 0x4, offset = 0x4, fixed_abs, tag = 'smem constant byte address 0x4 - core index']
  #allocation1 [shape = 'u32[144,128]{1,0:T(1,128)}', space=vmem, size = 0x12000, scoped, tag = 'internal scratch']
  %s0 = inlined_call_operand.hbm [shape: f32[288,128], index: 0, kind: input, shape index: {}]
  %s1 = inlined_call_operand.hbm [shape: f32[288,128], index: 1, kind: input, shape index: {}]
  %s2 = inlined_call_operand.hbm [shape: f32[1,8,128], index: 2, kind: output, shape index: {}]
  %s3 = sld [smem:[#allocation0]]
  $region61: #{tpu_custom_call.1} parent=0
    _
  %s5 = ssub.s32 1, %s3
  %s6 = scalar_select 0, %s5, %s3
  $region1: #{tpu_custom_call.1} parent=0
    #allocation2 [shape = 'u8[131072]{0}', space=vmem, size = 0x20000, scoped, tag = 'input window, operand 0']
    #allocation3 [shape = 's32[2]{0}', space=sflag, size = 0x8, scoped, tag = 'scoped memory for tpu_custom_call.1']
    #allocation4 [shape = 's32[2]{0}', space=sflag, size = 0x8, scoped, tag = 'scoped memory for tpu_custom_call.1']
    #allocation5 [shape = 'u8[131072]{0}', space=vmem, size = 0x20000, scoped, tag = 'input window, operand 1']
    #allocation6 [shape = 's32[2]{0}', space=sflag, size = 0x8, scoped, tag = 'scoped memory for tpu_custom_call.1']
    #allocation7 [shape = 'u8[4096]{0}', space=vmem, size = 0x1000, scoped, tag = 'output window, operand 0, single buffered']
    %7 = vsyncpa [#allocation3], 0
    %s8 = scalar_lea.sflag [#allocation3], 1
    %9 = vsyncpa %s8, 0
    %10 = vsyncpa [#allocation6], 0
    %s11 = scalar_lea.sflag [#allocation6], 1
    %12 = vsyncpa %s11, 0
    %13 = vsyncpa [#allocation4], 0
    loop: start=0, step=1, limit=5
    $region2: #{tpu_custom_call.1} parent=1 // loop_pre_header
      _
    $region3: #{tpu_custom_call.1} parent=1 // loop_header
      %s15 = sphi 0, %s19
      %p16 = scmp.ge.s32.totalorder %s15, 5
      %s22 = sphi 0, %s34
      %s23 = sphi 0, %s30
      %s24 = sphi 0, %s22
      %s25 = sphi 0, %s23
      %s26 = sphi 0, %s24
      %s27 = sphi 0, %s25
      %s45 = sphi 0, %s47
      %s48 = sphi 0, %s45
      %s49 = sphi 0, %s48
      %s65 = sphi 0, %s49
      %s79 = sphi 0, %s81
      %s82 = sphi 0, %s79
      %s83 = sphi 0, %s82
      %s99 = sphi 0, %s83
      %s105 = sphi 0, %s107
      %s108 = sphi 0, %s105
      %s109 = sphi 0, %s108
      %s125 = sphi 0, %s109
    $region4: #{tpu_custom_call.1} parent=1 // loop_header_branch
      %18 = sbr.rel (%p16) target = $region8
    $region5: #{tpu_custom_call.1} parent=1 // loop_body
      %s20 = ssub.s32 %s15, 1
      %s21 = ssub.s32 %s15, 2
      %s28 = sadd.s32 1, %s23
      %p29 = scmp.ge.s32.totalorder %s28, 3
      %s30 = scalar_select %p29, 0, %s28
      %s31 = sadd.s32 1, %s22
      %s32 = scalar_select %p29, %s31, %s22
      %p33 = scmp.ge.s32.totalorder %s32, 1
      %s34 = scalar_select %p33, 0, %s32
      %s35 = smul.u32 %s22, 3
      %s36 = sadd.s32 %s35, %s23
      %p37 = scmp.lt.s32.totalorder %s36, 2
      %s38 = scalar_select %p37, %s36, 2
      %s39 = smul.u32 %s34, 3
      %s40 = sadd.s32 %s39, %s30
      %p41 = scmp.lt.s32.totalorder %s40, 2
      %s42 = scalar_select %p41, %s40, 2
      %s43 = ssub.s32 %s38, %s42
      %p44 = scmp.eq.s32.totalorder %s43, 0
      %s46 = sadd.s32 %s45, 1
      %s47 = scalar_select %p44, %s45, %s46
      %p50 = pneg %p44
      %p51 = scmp.eq.s32.totalorder %s15, 2
      %p52 = por %p50, %p51
      %p53 = scmp.ne.s32.totalorder %s45, %s48
      %p54 = scmp.eq.s32.totalorder %s15, 0
      %p55 = por %p53, %p54
      %p56 = scmp.ne.s32.totalorder %s45, %s48
      %p57 = scmp.eq.s32.totalorder %s20, 2
      %p58 = por %p56, %p57
      %p59 = scmp.ne.s32.totalorder %s48, %s49
      %p60 = scmp.eq.s32.totalorder %s20, 0
      %p61 = por %p59, %p60
      %p62 = scmp.ne.s32.totalorder %s48, %s49
      %p63 = scmp.eq.s32.totalorder %s21, 2
      %p64 = por %p62, %p63
      %p66 = scmp.ne.s32.totalorder %s49, %s65
      %p67 = scmp.eq.s32.totalorder %s21, 0
      %p68 = por %p66, %p67
      %s69 = smul.u32 %s22, 3
      %s70 = sadd.s32 %s69, %s23
      %p71 = scmp.lt.s32.totalorder %s70, 2
      %s72 = scalar_select %p71, %s70, 2
      %s73 = smul.u32 %s34, 3
      %s74 = sadd.s32 %s73, %s30
      %p75 = scmp.lt.s32.totalorder %s74, 2
      %s76 = scalar_select %p75, %s74, 2
      %s77 = ssub.s32 %s72, %s76
      %p78 = scmp.eq.s32.totalorder %s77, 0
      %s80 = sadd.s32 %s79, 1
      %s81 = scalar_select %p78, %s79, %s80
      %p84 = pneg %p78
      %p85 = scmp.eq.s32.totalorder %s15, 2
      %p86 = por %p84, %p85
      %p87 = scmp.ne.s32.totalorder %s79, %s82
      %p88 = scmp.eq.s32.totalorder %s15, 0
      %p89 = por %p87, %p88
      %p90 = scmp.ne.s32.totalorder %s79, %s82
      %p91 = scmp.eq.s32.totalorder %s20, 2
      %p92 = por %p90, %p91
      %p93 = scmp.ne.s32.totalorder %s82, %s83
      %p94 = scmp.eq.s32.totalorder %s20, 0
      %p95 = por %p93, %p94
      %p96 = scmp.ne.s32.totalorder %s82, %s83
      %p97 = scmp.eq.s32.totalorder %s21, 2
      %p98 = por %p96, %p97
      %p100 = scmp.ne.s32.totalorder %s83, %s99
      %p101 = scmp.eq.s32.totalorder %s21, 0
      %p102 = por %p100, %p101
      %s103 = ssub.s32 %s22, %s34
      %p104 = scmp.eq.s32.totalorder %s103, 0
      %s106 = sadd.s32 %s105, 1
      %s107 = scalar_select %p104, %s105, %s106
      %p110 = pneg %p104
      %p111 = scmp.eq.s32.totalorder %s15, 2
      %p112 = por %p110, %p111
      %p113 = scmp.ne.s32.totalorder %s105, %s108
      %p114 = scmp.eq.s32.totalorder %s15, 0
      %p115 = por %p113, %p114
      %p116 = scmp.ne.s32.totalorder %s105, %s108
      %p117 = scmp.eq.s32.totalorder %s20, 2
      %p118 = por %p116, %p117
      %p119 = scmp.ne.s32.totalorder %s108, %s109
      %p120 = scmp.eq.s32.totalorder %s20, 0
      %p121 = por %p119, %p120
      %p122 = scmp.ne.s32.totalorder %s108, %s109
      %p123 = scmp.eq.s32.totalorder %s21, 2
      %p124 = por %p122, %p123
      %p126 = scmp.ne.s32.totalorder %s109, %s125
      %p127 = scmp.eq.s32.totalorder %s21, 0
      %p128 = por %p126, %p127
      %p129 = scmp.le.s32.totalorder 1, %s15
      %p130 = scmp.lt.s32.totalorder %s15, 4
      %p131 = pnand %p129, %p130
      %p132 = pneg %p131
      // Predicated region
      $region9: #{tpu_custom_call.1} parent=5 // pred_check
        _
      $region10: #{tpu_custom_call.1} parent=5 // pred_check_branch
        %134 = sbr.rel (%p131) target = $region12
      $region11: #{tpu_custom_call.1} parent=5 // pred_region
        %s135 = ssub.s32 %s15, 1
      $region12: #{tpu_custom_call.1} parent=5 // pred_fallthru
        _
      %p136 = scmp.lt.s32.totalorder %s15, 3
      // Predicated region
      $region13: #{tpu_custom_call.1} parent=5 // pred_check
        %p137 = pneg %p136
      $region14: #{tpu_custom_call.1} parent=5 // pred_check_branch
        %139 = sbr.rel (%p137) target = $region16
      $region15: #{tpu_custom_call.1} parent=5 // pred_region
        // Predicated region
        $region17: #{tpu_custom_call.1} parent=15 // pred_check
          %p140 = pneg %p55
        $region18: #{tpu_custom_call.1} parent=15 // pred_check_branch
          %142 = sbr.rel (%p140) target = $region20
        $region19: #{tpu_custom_call.1} parent=15 // pred_region
          %s143 = sand.u32 %s45, 1
          %s144 = scalar_lea.sflag [#allocation3], %s143
          %s145 = sand.u32 %s45, 1
          %s146 = smul.addr %s145, 128
          %s147 = scalar_lea.vmem [#allocation2], %s146
          %s148 = smul.u32 %s22, 3
          %s149 = sadd.s32 %s148, %s23
          %p150 = scmp.lt.s32.totalorder %s149, 2
          %s151 = scalar_select %p150, %s149, 2
          %s152 = smul.u32 16, %s151
          %s153 = ssub.s32 36, %s152
          %p154 = scmp.lt.s32.totalorder %s153, 16
          %s155 = scalar_select %p154, %s153, 16
          %s156 = smul.u32 128, %s155
          %s158 = ssub.s32 2048, %s156
          %159 = vsyncadd %s144, %s158
          %p160 = scmp.ne.s32.totalorder 0, %s156
          %s161 = smul.addr %s152, 128
          %s162 = scalar_lea.hbm %s0, %s161
          %s163 = smul.u32 8, %s155
          %s164 = sshll.u32 %s147, 4
          %s165 = int_to_ptr.vmem [resolvable:$true] %s164
          %s166 = sshll.u32 %s163, 4
          %170 = dma.hbm_to_vmem [thread:$0]  (%p160), %s162, %s166, %s165, %s144, 128, 128, 8
        $region20: #{tpu_custom_call.1} parent=15 // pred_fallthru
          _
        // Predicated region
        $region21: #{tpu_custom_call.1} parent=15 // pred_check
          %p171 = pneg %p89
        $region22: #{tpu_custom_call.1} parent=15 // pred_check_branch
          %173 = sbr.rel (%p171) target = $region24
        $region23: #{tpu_custom_call.1} parent=15 // pred_region
          %s174 = sand.u32 %s79, 1
          %s175 = scalar_lea.sflag [#allocation6], %s174
          %s176 = sand.u32 %s79, 1
          %s177 = smul.addr %s176, 128
          %s178 = scalar_lea.vmem [#allocation5], %s177
          %s179 = smul.u32 %s22, 3
          %s180 = sadd.s32 %s179, %s23
          %p181 = scmp.lt.s32.totalorder %s180, 2
          %s182 = scalar_select %p181, %s180, 2
          %s183 = smul.u32 16, %s182
          %s184 = ssub.s32 36, %s183
          %p185 = scmp.lt.s32.totalorder %s184, 16
          %s186 = scalar_select %p185, %s184, 16
          %s187 = smul.u32 128, %s186
          %s189 = ssub.s32 2048, %s187
          %190 = vsyncadd %s175, %s189
          %p191 = scmp.ne.s32.totalorder 0, %s187
          %s192 = smul.addr %s183, 128
          %s193 = scalar_lea.hbm %s1, %s192
          %s194 = smul.u32 8, %s186
          %s195 = sshll.u32 %s178, 4
          %s196 = int_to_ptr.vmem [resolvable:$true] %s195
          %s197 = sshll.u32 %s194, 4
          %201 = dma.hbm_to_vmem [thread:$0]  (%p191), %s193, %s197, %s196, %s175, 128, 128, 8
        $region24: #{tpu_custom_call.1} parent=15 // pred_fallthru
          _
      $region16: #{tpu_custom_call.1} parent=5 // pred_fallthru
        _
      %p202 = scmp.le.s32.totalorder 1, %s15
      %p203 = scmp.lt.s32.totalorder %s15, 4
      %p204 = pnand %p202, %p203
      %p205 = pneg %p204
      // Predicated region
      $region25: #{tpu_custom_call.1} parent=5 // pred_check
        _
      $region26: #{tpu_custom_call.1} parent=5 // pred_check_branch
        %207 = sbr.rel (%p204) target = $region28
      $region27: #{tpu_custom_call.1} parent=5 // pred_region
        %s208 = ssub.s32 %s15, 1
        %s209 = sand.u32 %s48, 1
        %s210 = scalar_lea.sflag [#allocation3], %s209
        %s211 = sand.u32 %s48, 1
        %s212 = smul.addr %s211, 128
        %s213 = scalar_lea.vmem [#allocation2], %s212
        // Predicated region
        $region29: #{tpu_custom_call.1} parent=27 // pred_check
          %p214 = pneg %p61
        $region30: #{tpu_custom_call.1} parent=27 // pred_check_branch
          %216 = sbr.rel (%p214) target = $region32
        $region31: #{tpu_custom_call.1} parent=27 // pred_region
          %217 = dma.done %s210, 2048
        $region32: #{tpu_custom_call.1} parent=27 // pred_fallthru
          _
        %s218 = sand.u32 %s82, 1
        %s219 = scalar_lea.sflag [#allocation6], %s218
        %s220 = sand.u32 %s82, 1
        %s221 = smul.addr %s220, 128
        %s222 = scalar_lea.vmem [#allocation5], %s221
        // Predicated region
        $region33: #{tpu_custom_call.1} parent=27 // pred_check
          %p223 = pneg %p95
        $region34: #{tpu_custom_call.1} parent=27 // pred_check_branch
          %225 = sbr.rel (%p223) target = $region36
        $region35: #{tpu_custom_call.1} parent=27 // pred_region
          %226 = dma.done %s219, 2048
        $region36: #{tpu_custom_call.1} parent=27 // pred_fallthru
          _
        %s227 = sand.u32 %s48, 1
        %s228 = scalar_lea.sflag [#allocation3], %s227
        %s229 = sand.u32 %s48, 1
        %s230 = smul.addr %s229, 128
        %s231 = scalar_lea.vmem [#allocation2], %s230
        %p232 = pneg %p61
        %p233 = pneg %p58
        %s234 = sand.u32 %s82, 1
        %s235 = scalar_lea.sflag [#allocation6], %s234
        %s236 = sand.u32 %s82, 1
        %s237 = smul.addr %s236, 128
        %s238 = scalar_lea.vmem [#allocation5], %s237
        %p239 = pneg %p95
        %p240 = pneg %p92
        %p241 = pneg %p121
        %p242 = pneg %p118
        %s243 = smul.u32 %s24, 3
        %s244 = sadd.s32 %s243, %s25
        %p245 = scmp.lt.s32.totalorder %s244, 2
        %s246 = scalar_select %p245, %s244, 2
        %s247 = smul.u32 16, %s246
        %s248 = ssub.s32 36, %s247
        %p249 = scmp.lt.s32.totalorder %s248, 16
        %s250 = scalar_select %p249, %s248, 16
        %s251 = smul.u32 128, %s250
        %s252 = smul.u32 %s24, 3
        %s253 = sadd.s32 %s252, %s25
        %p254 = scmp.lt.s32.totalorder %s253, 2
        %s255 = scalar_select %p254, %s253, 2
        %s256 = smul.u32 16, %s255
        %s257 = ssub.s32 36, %s256
        %p258 = scmp.lt.s32.totalorder %s257, 16
        %s259 = scalar_select %p258, %s257, 16
        %s260 = smul.u32 128, %s259
        %p261 = scmp.eq.s32.totalorder %s25, 0
        // Predicated region
        $region37: #{tpu_custom_call.1} parent=27 // pred_check
          %p262 = pneg %p261
        $region38: #{tpu_custom_call.1} parent=27 // pred_check_branch
          %264 = sbr.rel (%p262) target = $region40
        $region39: #{tpu_custom_call.1} parent=27 // pred_region
          %265 = vst [vmem:[#allocation7] sm:$0xff] 0.0
        $region40: #{tpu_custom_call.1} parent=27 // pred_fallthru
          _
        %v266 = vld [vmem:[%s213] sm:$0xff]
        %v267 = vld [vmem:[%s213 + $0x8] sm:$0xff]
        %v268 = vld [vmem:[%s213 + $0x10] sm:$0xff]
        %v269 = vld [vmem:[%s213 + $0x18] sm:$0xff]
        %v270 = vld [vmem:[%s213 + $0x20] sm:$0xff]
        %v271 = vld [vmem:[%s213 + $0x28] sm:$0xff]
        %v272 = vld [vmem:[%s213 + $0x30] sm:$0xff]
        %v273 = vld [vmem:[%s213 + $0x38] sm:$0xff]
        %v274 = vld [vmem:[%s213 + $0x40] sm:$0xff]
        %v275 = vld [vmem:[%s213 + $0x48] sm:$0xff]
        %v276 = vld [vmem:[%s213 + $0x50] sm:$0xff]
        %v277 = vld [vmem:[%s213 + $0x58] sm:$0xff]
        %v278 = vld [vmem:[%s213 + $0x60] sm:$0xff]
        %v279 = vld [vmem:[%s213 + $0x68] sm:$0xff]
        %v280 = vld [vmem:[%s213 + $0x70] sm:$0xff]
        %v281 = vld [vmem:[%s213 + $0x78] sm:$0xff]
        %v282 = vld [vmem:[%s222] sm:$0xff]
        %v283 = vld [vmem:[%s222 + $0x8] sm:$0xff]
        %v284 = vld [vmem:[%s222 + $0x10] sm:$0xff]
        %v285 = vld [vmem:[%s222 + $0x18] sm:$0xff]
        %v286 = vld [vmem:[%s222 + $0x20] sm:$0xff]
        %v287 = vld [vmem:[%s222 + $0x28] sm:$0xff]
        %v288 = vld [vmem:[%s222 + $0x30] sm:$0xff]
        %v289 = vld [vmem:[%s222 + $0x38] sm:$0xff]
        %v290 = vld [vmem:[%s222 + $0x40] sm:$0xff]
        %v291 = vld [vmem:[%s222 + $0x48] sm:$0xff]
        %v292 = vld [vmem:[%s222 + $0x50] sm:$0xff]
        %v293 = vld [vmem:[%s222 + $0x58] sm:$0xff]
        %v294 = vld [vmem:[%s222 + $0x60] sm:$0xff]
        %v295 = vld [vmem:[%s222 + $0x68] sm:$0xff]
        %v296 = vld [vmem:[%s222 + $0x70] sm:$0xff]
        %v297 = vld [vmem:[%s222 + $0x78] sm:$0xff]
        %v298 = vsub.f32 %v266, %v282
        %v299 = vsub.f32 %v267, %v283
        %v300 = vsub.f32 %v268, %v284
        %v301 = vsub.f32 %v269, %v285
        %v302 = vsub.f32 %v270, %v286
        %v303 = vsub.f32 %v271, %v287
        %v304 = vsub.f32 %v272, %v288
        %v305 = vsub.f32 %v273, %v289
        %v306 = vsub.f32 %v274, %v290
        %v307 = vsub.f32 %v275, %v291
        %v308 = vsub.f32 %v276, %v292
        %v309 = vsub.f32 %v277, %v293
        %v310 = vsub.f32 %v278, %v294
        %v311 = vsub.f32 %v279, %v295
        %v312 = vsub.f32 %v280, %v296
        %v313 = vsub.f32 %v281, %v297
        %s314 = smul.u32 %s24, 3
        %s315 = sadd.s32 %s314, %s25
        %s316 = smul.u32 %s315, 128
        %s317 = sadd.s32 %s316, 128
        %p318 = scmp.le.s32.totalorder %s317, 288
        // Predicated region
        $region41: #{tpu_custom_call.1} parent=27 // pred_check
          %p319 = pneg %p318
        $region42: #{tpu_custom_call.1} parent=27 // pred_check_branch
          %321 = sbr.rel (%p319) target = $region44
        $region43: #{tpu_custom_call.1} parent=27 // pred_region
          %v322 = vmul.f32 %v298, %v298
          %v323 = vmul.f32 %v299, %v299
          %v324 = vmul.f32 %v300, %v300
          %v325 = vmul.f32 %v301, %v301
          %v326 = vmul.f32 %v302, %v302
          %v327 = vmul.f32 %v303, %v303
          %v328 = vmul.f32 %v304, %v304
          %v329 = vmul.f32 %v305, %v305
          %v330 = vmul.f32 %v306, %v306
          %v331 = vmul.f32 %v307, %v307
          %v332 = vmul.f32 %v308, %v308
          %v333 = vmul.f32 %v309, %v309
          %v334 = vmul.f32 %v310, %v310
          %v335 = vmul.f32 %v311, %v311
          %v336 = vmul.f32 %v312, %v312
          %v337 = vmul.f32 %v313, %v313
          %v338 = vadd.f32 %v322, %v323
          %v339 = vadd.f32 %v338, %v324
          %v340 = vadd.f32 %v339, %v325
          %v341 = vadd.f32 %v340, %v326
          %v342 = vadd.f32 %v341, %v327
          %v343 = vadd.f32 %v342, %v328
          %v344 = vadd.f32 %v343, %v329
          %v345 = vadd.f32 %v344, %v330
          %v346 = vadd.f32 %v345, %v331
          %v347 = vadd.f32 %v346, %v332
          %v348 = vadd.f32 %v347, %v333
          %v349 = vadd.f32 %v348, %v334
          %v350 = vadd.f32 %v349, %v335
          %v351 = vadd.f32 %v350, %v336
          %v352 = vadd.f32 %v351, %v337
          %v353 = vld [vmem:[#allocation7] sm:$0xff]
          %v354 = vadd.f32 %v353, %v352
          %355 = vst [vmem:[#allocation7] sm:$0xff] %v354
        $region44: #{tpu_custom_call.1} parent=27 // pred_fallthru
          _
        %p356 = scmp.gt.s32.totalorder %s317, 288
        // Predicated region
        $region45: #{tpu_custom_call.1} parent=27 // pred_check
          %p357 = pneg %p356
        $region46: #{tpu_custom_call.1} parent=27 // pred_check_branch
          %359 = sbr.rel (%p357) target = $region48
        $region47: #{tpu_custom_call.1} parent=27 // pred_region
          %s360 = ssub.s32 288, %s316
          %v361 = vlaneseq
          %v362 = vshrl.u32 %v361, 7
          %v363 = vadd.s32 %v362, 8
          %v364 = vadd.s32 %v362, 16
          %v365 = vadd.s32 %v362, 24
          %v366 = vadd.s32 %v362, 32
          %v367 = vadd.s32 %v362, 40
          %v368 = vadd.s32 %v362, 48
          %v369 = vadd.s32 %v362, 56
          %v370 = vadd.s32 %v362, 64
          %v371 = vadd.s32 %v362, 72
          %v372 = vadd.s32 %v362, 80
          %v373 = vadd.s32 %v362, 88
          %v374 = vadd.s32 %v362, 96
          %v375 = vadd.s32 %v362, 104
          %v376 = vadd.s32 %v362, 112
          %v377 = vadd.s32 %v362, 120
          %v378 = vstv %s360
          %vm379 = vcmp.lt.s32.totalorder %v362, %v378
          %vm380 = vcmp.lt.s32.totalorder %v363, %v378
          %vm381 = vcmp.lt.s32.totalorder %v364, %v378
          %vm382 = vcmp.lt.s32.totalorder %v365, %v378
          %vm383 = vcmp.lt.s32.totalorder %v366, %v378
          %vm384 = vcmp.lt.s32.totalorder %v367, %v378
          %vm385 = vcmp.lt.s32.totalorder %v368, %v378
          %vm386 = vcmp.lt.s32.totalorder %v369, %v378
          %vm387 = vcmp.lt.s32.totalorder %v370, %v378
          %vm388 = vcmp.lt.s32.totalorder %v371, %v378
          %vm389 = vcmp.lt.s32.totalorder %v372, %v378
          %vm390 = vcmp.lt.s32.totalorder %v373, %v378
          %vm391 = vcmp.lt.s32.totalorder %v374, %v378
          %vm392 = vcmp.lt.s32.totalorder %v375, %v378
          %vm393 = vcmp.lt.s32.totalorder %v376, %v378
          %vm394 = vcmp.lt.s32.totalorder %v377, %v378
          %v395 = vsel %vm379, %v298, 0.0
          %v396 = vsel %vm380, %v299, 0.0
          %v397 = vsel %vm381, %v300, 0.0
          %v398 = vsel %vm382, %v301, 0.0
          %v399 = vsel %vm383, %v302, 0.0
          %v400 = vsel %vm384, %v303, 0.0
          %v401 = vsel %vm385, %v304, 0.0
          %v402 = vsel %vm386, %v305, 0.0
          %v403 = vsel %vm387, %v306, 0.0
          %v404 = vsel %vm388, %v307, 0.0
          %v405 = vsel %vm389, %v308, 0.0
          %v406 = vsel %vm390, %v309, 0.0
          %v407 = vsel %vm391, %v310, 0.0
          %v408 = vsel %vm392, %v311, 0.0
          %v409 = vsel %vm393, %v312, 0.0
          %v410 = vsel %vm394, %v313, 0.0
          %v411 = vmul.f32 %v395, %v395
          %v412 = vmul.f32 %v396, %v396
          %v413 = vmul.f32 %v397, %v397
          %v414 = vmul.f32 %v398, %v398
          %v415 = vmul.f32 %v399, %v399
          %v416 = vmul.f32 %v400, %v400
          %v417 = vmul.f32 %v401, %v401
          %v418 = vmul.f32 %v402, %v402
          %v419 = vmul.f32 %v403, %v403
          %v420 = vmul.f32 %v404, %v404
          %v421 = vmul.f32 %v405, %v405
          %v422 = vmul.f32 %v406, %v406
          %v423 = vmul.f32 %v407, %v407
          %v424 = vmul.f32 %v408, %v408
          %v425 = vmul.f32 %v409, %v409
          %v426 = vmul.f32 %v410, %v410
          %v427 = vadd.f32 %v411, %v412
          %v428 = vadd.f32 %v427, %v413
          %v429 = vadd.f32 %v428, %v414
          %v430 = vadd.f32 %v429, %v415
          %v431 = vadd.f32 %v430, %v416
          %v432 = vadd.f32 %v431, %v417
          %v433 = vadd.f32 %v432, %v418
          %v434 = vadd.f32 %v433, %v419
          %v435 = vadd.f32 %v434, %v420
          %v436 = vadd.f32 %v435, %v421
          %v437 = vadd.f32 %v436, %v422
          %v438 = vadd.f32 %v437, %v423
          %v439 = vadd.f32 %v438, %v424
          %v440 = vadd.f32 %v439, %v425
          %v441 = vadd.f32 %v440, %v426
          %v442 = vld [vmem:[#allocation7] sm:$0xff]
          %v443 = vadd.f32 %v442, %v441
          %444 = vst [vmem:[#allocation7] sm:$0xff] %v443
        $region48: #{tpu_custom_call.1} parent=27 // pred_fallthru
          _
        // Predicated region
        $region49: #{tpu_custom_call.1} parent=27 // pred_check
          %p445 = pneg %p118
        $region50: #{tpu_custom_call.1} parent=27 // pred_check_branch
          %447 = sbr.rel (%p445) target = $region52
        $region51: #{tpu_custom_call.1} parent=27 // pred_region
          %s449 = ssub.s32 128, 128
          %450 = vsyncadd [#allocation4], %s449
          %s451 = smul.addr %s24, 128
          %s452 = scalar_lea.hbm %s2, %s451
          %s454 = sshll.u32 [#allocation7], 4
          %s455 = int_to_ptr.vmem [resolvable:$true] %s454
          %457 = dma.vmem_to_hbm [thread:$0]  %s455, 128, %s452, [#allocation4]
        $region52: #{tpu_custom_call.1} parent=27 // pred_fallthru
          _
        // Predicated region
        $region53: #{tpu_custom_call.1} parent=27 // pred_check
          %p458 = pneg %p118
        $region54: #{tpu_custom_call.1} parent=27 // pred_check_branch
          %460 = sbr.rel (%p458) target = $region56
        $region55: #{tpu_custom_call.1} parent=27 // pred_region
          %461 = dma.done [#allocation4], 128
        $region56: #{tpu_custom_call.1} parent=27 // pred_fallthru
          _
      $region28: #{tpu_custom_call.1} parent=5 // pred_fallthru
        _
      %p462 = scmp.le.s32.totalorder 2, %s15
      // Predicated region
      $region57: #{tpu_custom_call.1} parent=5 // pred_check
        %p463 = pneg %p462
      $region58: #{tpu_custom_call.1} parent=5 // pred_check_branch
        %465 = sbr.rel (%p463) target = $region60
      $region59: #{tpu_custom_call.1} parent=5 // pred_region
        %s466 = ssub.s32 %s15, 2
      $region60: #{tpu_custom_call.1} parent=5 // pred_fallthru
        _
    $region6: #{tpu_custom_call.1} parent=1 // loop_footer
      %s19 = sadd.s32 1, %s15
    $region7: #{tpu_custom_call.1} parent=1 // loop_footer_branch
      %14 = sbr.rel target = $region3
    $region8: #{tpu_custom_call.1} parent=1 // loop_exit
      _
    %467 = vsyncpa [#allocation3], 1
    %s468 = scalar_lea.sflag [#allocation3], 1
    %469 = vsyncpa %s468, 1
    %470 = vsyncpa [#allocation6], 1
    %s471 = scalar_lea.sflag [#allocation6], 1
    %472 = vsyncpa %s471, 1
    %473 = vsyncpa [#allocation4], 1
    %s474 = scalar_lea.sflag [#allocation4], 1
    %475 = vsyncpa %s474, 1

</llo_original>
